<compile_context>
chip_gen: v6e
topology: v6e:2x2x1
jax: 0.10.0
libtpu: 0.0.40
codegen_flags: <defaults>
</compile_context>

<pallas_src>
import jax
import jax.numpy as jnp
from jax.experimental import pallas as pl
from jax.experimental.pallas import tpu as pltpu


def _round_up(x, m):
    return ((x + m - 1) // m) * m


def ffn_kernel(x_ref, w1_ref, b1_ref, w2_ref, b2_ref, o_ref, acc_ref):
    """One (row-tile i, F-tile j) step: acc += relu(x @ w1_j + b1_j) @ w2_j."""
    j = pl.program_id(1)

    @pl.when(j == 0)
    def _():
        acc_ref[...] = jnp.zeros_like(acc_ref)

    # fc1: bf16 (or caller compute dtype) on the MXU, f32 accumulate.
    h = jnp.dot(x_ref[...], w1_ref[...], preferred_element_type=jnp.float32)
    # bias + ReLU in f32.
    h = jnp.maximum(h + b1_ref[...], 0.0)
    # dropout (inference) = identity.
    # fc2 partial product for this F tile, accumulated in the f32 scratch.
    acc_ref[...] += jnp.dot(h.astype(x_ref.dtype), w2_ref[...],
                            preferred_element_type=jnp.float32)

    @pl.when(j == pl.num_programs(1) - 1)
    def _():
        o_ref[...] = (acc_ref[...] + b2_ref[...]).astype(o_ref.dtype)


def _pick_tf(F_pad, H_pad, bytes_c, budget_bytes):
    """Largest tf (multiple of 128, divides F_pad) whose w1+w2 tiles fit budget."""
    nchunks = F_pad // 128
    max_chunks = max(1, budget_bytes // (2 * H_pad * 128 * bytes_c))
    d = min(nchunks, max_chunks)
    while nchunks % d != 0:
        d -= 1
    return d * 128


def _build_ffn_call(N_pad, H_pad, F_pad, tm, tf, compute_dtype, out_dtype,
                    single_buffer_resident):
    ni = N_pad // tm
    nj = F_pad // tf

    def resident_spec(shape, index_map):
        # Constant-index blocks are fetched once; single-buffer them to halve
        # their VMEM footprint.
        if single_buffer_resident:
            return pl.BlockSpec(shape, index_map, pipeline_mode=pl.Buffered(1))
        return pl.BlockSpec(shape, index_map)

    # Weights are only truly resident (never re-DMA'd) when there is a single
    # F tile; otherwise keep default double-buffering to hide their DMA.
    w_spec = resident_spec if nj == 1 else pl.BlockSpec

    bytes_c = jnp.dtype(compute_dtype).itemsize
    bytes_o = jnp.dtype(out_dtype).itemsize
    wbuf = 1 if (nj == 1 and single_buffer_resident) else 2
    vmem_need = (
        2 * tm * H_pad * bytes_c            # x tile (double-buffered)
        + 2 * tm * H_pad * bytes_o          # out tile (double-buffered)
        + wbuf * 2 * H_pad * tf * bytes_c   # w1 + w2 tiles
        + wbuf * (tf + H_pad) * 4 * 8       # biases (sublane-padded, approx)
        + tm * H_pad * 4                    # f32 accumulator scratch
        + tm * tf * 4                       # f32 intermediate h
    )
    # Explicit scoped VMEM limit: enough for the tiles + headroom, capped at
    # v7x's 64 MiB physical ceiling (safe on v5e/v6e too).
    vmem_limit = max(32 << 20, min(int(vmem_need * 3 // 2) + (2 << 20), 64 << 20))

    weight_bytes = 2 * H_pad * F_pad * bytes_c
    cost = pl.CostEstimate(
        flops=4 * N_pad * H_pad * F_pad,
        transcendentals=0,
        bytes_accessed=(N_pad * H_pad * (bytes_c + bytes_o)
                        + weight_bytes * (1 if nj == 1 else ni)),
    )

    return pl.pallas_call(
        ffn_kernel,
        out_shape=jax.ShapeDtypeStruct((N_pad, H_pad), out_dtype),
        grid_spec=pltpu.PrefetchScalarGridSpec(
            num_scalar_prefetch=0,
            grid=(ni, nj),                                       # reduction last
            in_specs=[
                pl.BlockSpec((tm, H_pad), lambda i, j: (i, 0)),  # x row tile
                w_spec((H_pad, tf), lambda i, j: (0, j)),        # w1
                w_spec((1, tf), lambda i, j: (0, j)),            # b1
                w_spec((tf, H_pad), lambda i, j: (j, 0)),        # w2
                resident_spec((1, H_pad), lambda i, j: (0, 0)),  # b2
            ],
            out_specs=pl.BlockSpec((tm, H_pad), lambda i, j: (i, 0)),
            scratch_shapes=[pltpu.VMEM((tm, H_pad), jnp.float32)],
        ),
        compiler_params=pltpu.CompilerParams(
            dimension_semantics=("parallel", "arbitrary"),
            vmem_limit_bytes=vmem_limit,
        ),
        cost_estimate=cost,
    )


def ffn_forward(x, w1, b1, w2, b2, *, tm=256, compute_dtype=jnp.bfloat16,
                ff_tile_budget_bytes=12 << 20):
    """Fused FFN forward: fc2(dropout(relu(fc1(x)))), inference dropout.

    x: (..., H). w1: (H, F), b1: (F,), w2: (F, H), b2: (H,) -- weights stored
    as (in, out), i.e. transposed vs. torch nn.Linear's (out, in) layout.
    """
    orig_shape = x.shape
    out_dtype = x.dtype
    H = orig_shape[-1]
    F = w1.shape[1]
    x2d = x.reshape(-1, H)
    N = x2d.shape[0]

    # Lane-dense padded sizes; zero padding is numerically exact for this FFN.
    H_pad = _round_up(H, 128)
    F_pad = _round_up(F, 128)
    # Don't blow tiny batches up to a full 256-row tile; multiples of 32 keep
    # the sublane packing legal for f32/bf16/int8 row tiles.
    tm = min(tm, max(32, _round_up(N, 32)))
    N_pad = _round_up(N, tm)

    bytes_c = jnp.dtype(compute_dtype).itemsize
    tf = _pick_tf(F_pad, H_pad, bytes_c, ff_tile_budget_bytes)

    # Cast matmul operands to the (bf16) compute dtype; biases stay f32.
    x_p = jnp.pad(x2d.astype(compute_dtype), ((0, N_pad - N), (0, H_pad - H)))
    w1_p = jnp.pad(w1.astype(compute_dtype), ((0, H_pad - H), (0, F_pad - F)))
    w2_p = jnp.pad(w2.astype(compute_dtype), ((0, F_pad - F), (0, H_pad - H)))
    b1_p = jnp.pad(b1.astype(jnp.float32), (0, F_pad - F)).reshape(1, F_pad)
    b2_p = jnp.pad(b2.astype(jnp.float32), (0, H_pad - H)).reshape(1, H_pad)

    args = (x_p, w1_p, b1_p, w2_p, b2_p)
    try:
        out = _build_ffn_call(N_pad, H_pad, F_pad, tm, tf, compute_dtype,
                              out_dtype, single_buffer_resident=True)(*args)
    except Exception:
        # Fallback if this JAX/Mosaic version rejects pipeline_mode=Buffered(1)
        # for top-level pallas_call specs (correctness identical, a bit more
        # VMEM for the resident weights).
        out = _build_ffn_call(N_pad, H_pad, F_pad, tm, tf, compute_dtype,
                              out_dtype, single_buffer_resident=False)(*args)

    return out[:N, :H].reshape(orig_shape)


def init_ffn_params(key, hidden_size, ff_size, dtype=jnp.float32):
    """nn.Linear-style uniform(-1/sqrt(fan_in), 1/sqrt(fan_in)) init.
    Weights stored as (in, out) = torch weight transposed."""
    k1, k2, k3, k4 = jax.random.split(key, 4)
    lim1 = 1.0 / (hidden_size ** 0.5)
    lim2 = 1.0 / (ff_size ** 0.5)
    w1 = jax.random.uniform(k1, (hidden_size, ff_size), dtype, -lim1, lim1)
    b1 = jax.random.uniform(k2, (ff_size,), dtype, -lim1, lim1)
    w2 = jax.random.uniform(k3, (ff_size, hidden_size), dtype, -lim2, lim2)
    b2 = jax.random.uniform(k4, (hidden_size,), dtype, -lim2, lim2)
    return w1, b1, w2, b2


if __name__ == "__main__":
    # Small config consistent with the module: HIDDEN_SIZE=32, FF_SIZE=64.
    batch, seq, hidden, ff = 2, 8, 32, 64

    key = jax.random.PRNGKey(0)
    kx, kp = jax.random.split(key)
    x = jax.random.normal(kx, (batch, seq, hidden), jnp.float32)
    w1, b1, w2, b2 = init_ffn_params(kp, hidden, ff)

    out = ffn_forward(x, w1, b1, w2, b2)
    out = jax.block_until_ready(out)
    assert out.shape == x.shape

    # Reference with the same bf16-matmul / f32-accumulate recipe (tight check).
    xb, w1b, w2b = (a.astype(jnp.bfloat16) for a in (x, w1, w2))
    h_ref = jnp.maximum(
        jnp.dot(xb.reshape(-1, hidden), w1b,
                preferred_element_type=jnp.float32) + b1, 0.0)
    ref = (jnp.dot(h_ref.astype(jnp.bfloat16), w2b,
                   preferred_element_type=jnp.float32) + b2).reshape(x.shape)
    assert jnp.allclose(out, ref, atol=5e-3, rtol=5e-3), \
        float(jnp.max(jnp.abs(out - ref)))

    # Loose check against the pure-f32 torch-equivalent reference
    # (difference is only bf16 matmul rounding).
    ref32 = jnp.maximum(x @ w1 + b1, 0.0) @ w2 + b2
    assert jnp.allclose(out, ref32, atol=5e-2, rtol=5e-2)

    print("KERNEL_OK")
</pallas_src>

<mosaic_0001>
module attributes {stable_mosaic.version = 11 : i64} {
  func.func @ffn_kernel(%arg0: i32, %arg1: i32, %arg2: memref<32x128xbf16, #tpu.memory_space<vmem>>, %arg3: memref<128x128xbf16, #tpu.memory_space<vmem>>, %arg4: memref<1x128xf32, #tpu.memory_space<vmem>>, %arg5: memref<128x128xbf16, #tpu.memory_space<vmem>>, %arg6: memref<1x128xf32, #tpu.memory_space<vmem>>, %arg7: memref<32x128xf32, #tpu.memory_space<vmem>>, %arg8: memref<32x128xf32, #tpu.memory_space<vmem>>) attributes {dimension_semantics = [#tpu.dimension_semantics<parallel>, #tpu.dimension_semantics<arbitrary>], iteration_bounds = array<i64: 1, 1>, scalar_prefetch = 0 : i64, scratch_operands = 1 : i64, tpu.core_type = #tpu.core_type<tc>, window_params = [{transform_indices = @transform_0, window_bounds = array<i64: 32, 128>}, {pipeline_mode = #tpu.pipeline_mode<synchronous>, transform_indices = @transform_1, window_bounds = array<i64: 128, 128>}, {pipeline_mode = #tpu.pipeline_mode<synchronous>, transform_indices = @transform_2, window_bounds = array<i64: 1, 128>}, {pipeline_mode = #tpu.pipeline_mode<synchronous>, transform_indices = @transform_3, window_bounds = array<i64: 128, 128>}, {pipeline_mode = #tpu.pipeline_mode<synchronous>, transform_indices = @transform_4, window_bounds = array<i64: 1, 128>}, {transform_indices = @transform_5, window_bounds = array<i64: 32, 128>}]} {
    %c0_i32 = arith.constant 0 : i32
    %0 = arith.cmpi eq, %arg1, %c0_i32 : i32
    %1 = arith.extui %0 : i1 to i32
    %c0_i32_0 = arith.constant 0 : i32
    %2 = arith.cmpi ne, %1, %c0_i32_0 : i32
    scf.if %2 {
      %cst_16 = arith.constant 0.000000e+00 : f32
      %20 = vector.broadcast %cst_16 : f32 to vector<32x128xf32>
      %c0_17 = arith.constant 0 : index
      %c0_18 = arith.constant 0 : index
      %21 = vector.load %arg8[%c0_17, %c0_18] : memref<32x128xf32, #tpu.memory_space<vmem>>, vector<32x128xf32>
      tpu.vector_store %arg8[%c0_17, %c0_18], %20 {strides = array<i32>} : memref<32x128xf32, #tpu.memory_space<vmem>>, vector<32x128xf32>,
    } else {
    }
    %c0 = arith.constant 0 : index
    %c0_1 = arith.constant 0 : index
    %3 = vector.load %arg2[%c0, %c0_1] : memref<32x128xbf16, #tpu.memory_space<vmem>>, vector<32x128xbf16>
    %c0_2 = arith.constant 0 : index
    %c0_3 = arith.constant 0 : index
    %4 = vector.load %arg3[%c0_2, %c0_3] : memref<128x128xbf16, #tpu.memory_space<vmem>>, vector<128x128xbf16>
    %cst = arith.constant dense<0.000000e+00> : vector<32x128xf32>
    %5 = tpu.matmul %3, %4, %cst {dimension_numbers = #tpu.dot_dimension_numbers<[1], [0], [0], [1], [0, 0, 1, 1], [], []>} : vector<32x128xbf16>, vector<128x128xbf16>, vector<32x128xf32> -> vector<32x128xf32>
    %c0_4 = arith.constant 0 : index
    %c0_5 = arith.constant 0 : index
    %6 = vector.load %arg4[%c0_4, %c0_5] : memref<1x128xf32, #tpu.memory_space<vmem>>, vector<1x128xf32>
    %7 = vector.broadcast %6 : vector<1x128xf32> to vector<32x128xf32>
    %8 = arith.addf %5, %7 : vector<32x128xf32>
    %cst_6 = arith.constant 0.000000e+00 : f32
    %9 = vector.broadcast %cst_6 : f32 to vector<32x128xf32>
    %10 = arith.maximumf %8, %9 : vector<32x128xf32>
    %c0_7 = arith.constant 0 : index
    %c0_8 = arith.constant 0 : index
    %11 = vector.load %arg8[%c0_7, %c0_8] : memref<32x128xf32, #tpu.memory_space<vmem>>, vector<32x128xf32>
    %12 = arith.truncf %10 : vector<32x128xf32> to vector<32x128xbf16>
    %c0_9 = arith.constant 0 : index
    %c0_10 = arith.constant 0 : index
    %13 = vector.load %arg5[%c0_9, %c0_10] : memref<128x128xbf16, #tpu.memory_space<vmem>>, vector<128x128xbf16>
    %cst_11 = arith.constant dense<0.000000e+00> : vector<32x128xf32>
    %14 = tpu.matmul %12, %13, %cst_11 {dimension_numbers = #tpu.dot_dimension_numbers<[1], [0], [0], [1], [0, 0, 1, 1], [], []>} : vector<32x128xbf16>, vector<128x128xbf16>, vector<32x128xf32> -> vector<32x128xf32>
    %15 = arith.addf %11, %14 : vector<32x128xf32>
    %c0_12 = arith.constant 0 : index
    %c0_13 = arith.constant 0 : index
    %16 = vector.load %arg8[%c0_12, %c0_13] : memref<32x128xf32, #tpu.memory_space<vmem>>, vector<32x128xf32>
    tpu.vector_store %arg8[%c0_12, %c0_13], %15 {strides = array<i32>} : memref<32x128xf32, #tpu.memory_space<vmem>>, vector<32x128xf32>,
    %c0_i32_14 = arith.constant 0 : i32
    %17 = arith.cmpi eq, %arg1, %c0_i32_14 : i32
    %18 = arith.extui %17 : i1 to i32
    %c0_i32_15 = arith.constant 0 : i32
    %19 = arith.cmpi ne, %18, %c0_i32_15 : i32
    scf.if %19 {
      %c0_16 = arith.constant 0 : index
      %c0_17 = arith.constant 0 : index
      %20 = vector.load %arg8[%c0_16, %c0_17] : memref<32x128xf32, #tpu.memory_space<vmem>>, vector<32x128xf32>
      %c0_18 = arith.constant 0 : index
      %c0_19 = arith.constant 0 : index
      %21 = vector.load %arg6[%c0_18, %c0_19] : memref<1x128xf32, #tpu.memory_space<vmem>>, vector<1x128xf32>
      %22 = vector.broadcast %21 : vector<1x128xf32> to vector<32x128xf32>
      %23 = arith.addf %20, %22 : vector<32x128xf32>
      %c0_20 = arith.constant 0 : index
      %c0_21 = arith.constant 0 : index
      %24 = vector.load %arg7[%c0_20, %c0_21] : memref<32x128xf32, #tpu.memory_space<vmem>>, vector<32x128xf32>
      tpu.vector_store %arg7[%c0_20, %c0_21], %23 {strides = array<i32>} : memref<32x128xf32, #tpu.memory_space<vmem>>, vector<32x128xf32>,
    } else {
    }
    return
  }
  func.func @transform_0(%arg0: i32, %arg1: i32) -> (i32, i32) {
    %c0_i32 = arith.constant 0 : i32
    %c0_i32_0 = arith.constant 0 : i32
    return %arg0, %c0_i32 : i32, i32
  }
  func.func @transform_1(%arg0: i32, %arg1: i32) -> (i32, i32) {
    %c0_i32 = arith.constant 0 : i32
    %c0_i32_0 = arith.constant 0 : i32
    return %c0_i32, %arg1 : i32, i32
  }
  func.func @transform_2(%arg0: i32, %arg1: i32) -> (i32, i32) {
    %c0_i32 = arith.constant 0 : i32
    %c0_i32_0 = arith.constant 0 : i32
    return %c0_i32, %arg1 : i32, i32
  }
  func.func @transform_3(%arg0: i32, %arg1: i32) -> (i32, i32) {
    %c0_i32 = arith.constant 0 : i32
    %c0_i32_0 = arith.constant 0 : i32
    return %arg1, %c0_i32 : i32, i32
  }
  func.func @transform_4(%arg0: i32, %arg1: i32) -> (i32, i32) {
    %c0_i32 = arith.constant 0 : i32
    %c0_i32_0 = arith.constant 0 : i32
    %c0_i32_1 = arith.constant 0 : i32
    return %c0_i32, %c0_i32_0 : i32, i32
  }
  func.func @transform_5(%arg0: i32, %arg1: i32) -> (i32, i32) {
    %c0_i32 = arith.constant 0 : i32
    %c0_i32_0 = arith.constant 0 : i32
    return %arg0, %c0_i32 : i32, i32
  }
}

module attributes {stable_mosaic.version = 11 : i64} {
  func.func @ffn_kernel(%arg0: i32, %arg1: i32, %arg2: memref<32x128xbf16, #tpu.memory_space<vmem>>, %arg3: memref<128x128xbf16, #tpu.memory_space<vmem>>, %arg4: memref<1x128xf32, #tpu.memory_space<vmem>>, %arg5: memref<128x128xbf16, #tpu.memory_space<vmem>>, %arg6: memref<1x128xf32, #tpu.memory_space<vmem>>, %arg7: memref<32x128xf32, #tpu.memory_space<vmem>>, %arg8: memref<32x128xf32, #tpu.memory_space<vmem>>) attributes {dimension_semantics = [#tpu.dimension_semantics<parallel>, #tpu.dimension_semantics<arbitrary>], iteration_bounds = array<i64: 1, 1>, scalar_prefetch = 0 : i64, scratch_operands = 1 : i64, tpu.core_type = #tpu.core_type<tc>, window_params = [{transform_indices = @transform_0, window_bounds = array<i64: 32, 128>}, {transform_indices = @transform_1, window_bounds = array<i64: 128, 128>}, {transform_indices = @transform_2, window_bounds = array<i64: 1, 128>}, {transform_indices = @transform_3, window_bounds = array<i64: 128, 128>}, {pipeline_mode = #tpu.pipeline_mode<synchronous>, transform_indices = @transform_4, window_bounds = array<i64: 1, 128>}, {transform_indices = @transform_5, window_bounds = array<i64: 32, 128>}]} {
    %c0_i32 = arith.constant 0 : i32
    %0 = arith.cmpi eq, %arg1, %c0_i32 : i32
    %1 = arith.extui %0 : i1 to i32
    %c0_i32_0 = arith.constant 0 : i32
    %2 = arith.cmpi ne, %1, %c0_i32_0 : i32
    scf.if %2 {
      %cst_16 = arith.constant 0.000000e+00 : f32
      %20 = vector.broadcast %cst_16 : f32 to vector<32x128xf32>
      %c0_17 = arith.constant 0 : index
      %c0_18 = arith.constant 0 : index
      %21 = vector.load %arg8[%c0_17, %c0_18] : memref<32x128xf32, #tpu.memory_space<vmem>>, vector<32x128xf32>
      tpu.vector_store %arg8[%c0_17, %c0_18], %20 {strides = array<i32>} : memref<32x128xf32, #tpu.memory_space<vmem>>, vector<32x128xf32>,
    } else {
    }
    %c0 = arith.constant 0 : index
    %c0_1 = arith.constant 0 : index
    %3 = vector.load %arg2[%c0, %c0_1] : memref<32x128xbf16, #tpu.memory_space<vmem>>, vector<32x128xbf16>
    %c0_2 = arith.constant 0 : index
    %c0_3 = arith.constant 0 : index
    %4 = vector.load %arg3[%c0_2, %c0_3] : memref<128x128xbf16, #tpu.memory_space<vmem>>, vector<128x128xbf16>
    %cst = arith.constant dense<0.000000e+00> : vector<32x128xf32>
    %5 = tpu.matmul %3, %4, %cst {dimension_numbers = #tpu.dot_dimension_numbers<[1], [0], [0], [1], [0, 0, 1, 1], [], []>} : vector<32x128xbf16>, vector<128x128xbf16>, vector<32x128xf32> -> vector<32x128xf32>
    %c0_4 = arith.constant 0 : index
    %c0_5 = arith.constant 0 : index
    %6 = vector.load %arg4[%c0_4, %c0_5] : memref<1x128xf32, #tpu.memory_space<vmem>>, vector<1x128xf32>
    %7 = vector.broadcast %6 : vector<1x128xf32> to vector<32x128xf32>
    %8 = arith.addf %5, %7 : vector<32x128xf32>
    %cst_6 = arith.constant 0.000000e+00 : f32
    %9 = vector.broadcast %cst_6 : f32 to vector<32x128xf32>
    %10 = arith.maximumf %8, %9 : vector<32x128xf32>
    %c0_7 = arith.constant 0 : index
    %c0_8 = arith.constant 0 : index
    %11 = vector.load %arg8[%c0_7, %c0_8] : memref<32x128xf32, #tpu.memory_space<vmem>>, vector<32x128xf32>
    %12 = arith.truncf %10 : vector<32x128xf32> to vector<32x128xbf16>
    %c0_9 = arith.constant 0 : index
    %c0_10 = arith.constant 0 : index
    %13 = vector.load %arg5[%c0_9, %c0_10] : memref<128x128xbf16, #tpu.memory_space<vmem>>, vector<128x128xbf16>
    %cst_11 = arith.constant dense<0.000000e+00> : vector<32x128xf32>
    %14 = tpu.matmul %12, %13, %cst_11 {dimension_numbers = #tpu.dot_dimension_numbers<[1], [0], [0], [1], [0, 0, 1, 1], [], []>} : vector<32x128xbf16>, vector<128x128xbf16>, vector<32x128xf32> -> vector<32x128xf32>
    %15 = arith.addf %11, %14 : vector<32x128xf32>
    %c0_12 = arith.constant 0 : index
    %c0_13 = arith.constant 0 : index
    %16 = vector.load %arg8[%c0_12, %c0_13] : memref<32x128xf32, #tpu.memory_space<vmem>>, vector<32x128xf32>
    tpu.vector_store %arg8[%c0_12, %c0_13], %15 {strides = array<i32>} : memref<32x128xf32, #tpu.memory_space<vmem>>, vector<32x128xf32>,
    %c0_i32_14 = arith.constant 0 : i32
    %17 = arith.cmpi eq, %arg1, %c0_i32_14 : i32
    %18 = arith.extui %17 : i1 to i32
    %c0_i32_15 = arith.constant 0 : i32
    %19 = arith.cmpi ne, %18, %c0_i32_15 : i32
    scf.if %19 {
      %c0_16 = arith.constant 0 : index
      %c0_17 = arith.constant 0 : index
      %20 = vector.load %arg8[%c0_16, %c0_17] : memref<32x128xf32, #tpu.memory_space<vmem>>, vector<32x128xf32>
      %c0_18 = arith.constant 0 : index
      %c0_19 = arith.constant 0 : index
      %21 = vector.load %arg6[%c0_18, %c0_19] : memref<1x128xf32, #tpu.memory_space<vmem>>, vector<1x128xf32>
      %22 = vector.broadcast %21 : vector<1x128xf32> to vector<32x128xf32>
      %23 = arith.addf %20, %22 : vector<32x128xf32>
      %c0_20 = arith.constant 0 : index
      %c0_21 = arith.constant 0 : index
      %24 = vector.load %arg7[%c0_20, %c0_21] : memref<32x128xf32, #tpu.memory_space<vmem>>, vector<32x128xf32>
      tpu.vector_store %arg7[%c0_20, %c0_21], %23 {strides = array<i32>} : memref<32x128xf32, #tpu.memory_space<vmem>>, vector<32x128xf32>,
    } else {
    }
    return
  }
  func.func @transform_0(%arg0: i32, %arg1: i32) -> (i32, i32) {
    %c0_i32 = arith.constant 0 : i32
    %c0_i32_0 = arith.constant 0 : i32
    return %arg0, %c0_i32 : i32, i32
  }
  func.func @transform_1(%arg0: i32, %arg1: i32) -> (i32, i32) {
    %c0_i32 = arith.constant 0 : i32
    %c0_i32_0 = arith.constant 0 : i32
    return %c0_i32, %arg1 : i32, i32
  }
  func.func @transform_2(%arg0: i32, %arg1: i32) -> (i32, i32) {
    %c0_i32 = arith.constant 0 : i32
    %c0_i32_0 = arith.constant 0 : i32
    return %c0_i32, %arg1 : i32, i32
  }
  func.func @transform_3(%arg0: i32, %arg1: i32) -> (i32, i32) {
    %c0_i32 = arith.constant 0 : i32
    %c0_i32_0 = arith.constant 0 : i32
    return %arg1, %c0_i32 : i32, i32
  }
  func.func @transform_4(%arg0: i32, %arg1: i32) -> (i32, i32) {
    %c0_i32 = arith.constant 0 : i32
    %c0_i32_0 = arith.constant 0 : i32
    %c0_i32_1 = arith.constant 0 : i32
    return %c0_i32, %c0_i32_0 : i32, i32
  }
  func.func @transform_5(%arg0: i32, %arg1: i32) -> (i32, i32) {
    %c0_i32 = arith.constant 0 : i32
    %c0_i32_0 = arith.constant 0 : i32
    return %arg0, %c0_i32 : i32, i32
  }
}

</mosaic_0001>

<llo_original>
// kernel: tpu_custom_call.1
$region0: #{tpu_custom_call.1}
  #allocation0 [shape = 'u32[]', space=smem, size = 0x4, offset = 0x4, fixed_abs, tag = 'smem constant byte address 0x4 - core index']
  #allocation1 [shape = 'u32[144,128]{1,0:T(1,128)}', space=vmem, size = 0x12000, scoped, tag = 'internal scratch']
  #allocation2 [shape = 'f32[32,128]{1,0:T(8,128)}', space=vmem, size = 0x4000, scoped, tag = 'scratch operand']
  %s0 = inlined_call_operand.hbm [shape: bf16[32,128], index: 0, kind: input, shape index: {}]
  %s1 = inlined_call_operand.hbm [shape: bf16[128,128], index: 1, kind: input, shape index: {}]
  %s2 = inlined_call_operand.vmem [shape: f32[1,128], index: 2, kind: input, shape index: {}]
  %s3 = inlined_call_operand.hbm [shape: bf16[128,128], index: 3, kind: input, shape index: {}]
  %s4 = inlined_call_operand.vmem [shape: f32[1,128], index: 4, kind: input, shape index: {}]
  %s5 = inlined_call_operand.hbm [shape: f32[32,128], index: 5, kind: output, shape index: {}]
  %s6 = sld [smem:[#allocation0]]
  $region50: #{tpu_custom_call.1} parent=0
    _
  %s8 = ssub.s32 1, %s6
  %s9 = scalar_select 0, %s8, %s6
  $region1: #{tpu_custom_call.1} parent=0
    #allocation3 [shape = 'u8[8192]{0}', space=vmem, size = 0x2000, scoped, tag = 'input window, operand 0, single buffered']
    #allocation4 [shape = 's32[1]{0}', space=sflag, size = 0x4, scoped, tag = 'scoped memory for tpu_custom_call.1']
    #allocation5 [shape = 's32[1]{0}', space=sflag, size = 0x4, scoped, tag = 'scoped memory for tpu_custom_call.1']
    #allocation6 [shape = 'u8[32768]{0}', space=vmem, size = 0x8000, scoped, tag = 'input window, operand 1, single buffered']
    #allocation7 [shape = 's32[1]{0}', space=sflag, size = 0x4, scoped, tag = 'scoped memory for tpu_custom_call.1']
    #allocation8 [shape = 'u8[32768]{0}', space=vmem, size = 0x8000, scoped, tag = 'input window, operand 3, single buffered']
    #allocation9 [shape = 'u8[16384]{0}', space=vmem, size = 0x4000, scoped, tag = 'output window, operand 0, single buffered']
    %10 = vsyncpa [#allocation4], 0
    %11 = vsyncpa [#allocation7], 0
    %12 = vsyncpa [#allocation5], 0
    // Predicated region
    $region2: #{tpu_custom_call.1} parent=1 // pred_check
      _
    $region3: #{tpu_custom_call.1} parent=1 // pred_check_branch
      %14 = sbr.rel (0) target = $region5
    $region4: #{tpu_custom_call.1} parent=1 // pred_region
      %s16 = ssub.s32 256, 256
      %17 = vsyncadd [#allocation4], %s16
      %s18 = sshll.u32 [#allocation3], 4
      %s19 = int_to_ptr.vmem [resolvable:$true] %s18
      %24 = dma.hbm_to_vmem [thread:$0]  %s0, 256, %s19, [#allocation4], 64, 64, 4
    $region5: #{tpu_custom_call.1} parent=1 // pred_fallthru
      _
    // Predicated region
    $region6: #{tpu_custom_call.1} parent=1 // pred_check
      _
    $region7: #{tpu_custom_call.1} parent=1 // pred_check_branch
      %26 = sbr.rel (0) target = $region9
    $region8: #{tpu_custom_call.1} parent=1 // pred_region
      %s28 = ssub.s32 1024, 1024
      %29 = vsyncadd [#allocation7], %s28
      %s30 = sshll.u32 [#allocation6], 4
      %s31 = int_to_ptr.vmem [resolvable:$true] %s30
      %36 = dma.hbm_to_vmem [thread:$0]  %s1, 1024, %s31, [#allocation7], 64, 64, 4
    $region9: #{tpu_custom_call.1} parent=1 // pred_fallthru
      _
    // Predicated region
    $region10: #{tpu_custom_call.1} parent=1 // pred_check
      _
    $region11: #{tpu_custom_call.1} parent=1 // pred_check_branch
      %38 = sbr.rel (0) target = $region13
    $region12: #{tpu_custom_call.1} parent=1 // pred_region
      _
    $region13: #{tpu_custom_call.1} parent=1 // pred_fallthru
      _
    // Predicated region
    $region14: #{tpu_custom_call.1} parent=1 // pred_check
      _
    $region15: #{tpu_custom_call.1} parent=1 // pred_check_branch
      %40 = sbr.rel (0) target = $region17
    $region16: #{tpu_custom_call.1} parent=1 // pred_region
      %s42 = ssub.s32 1024, 1024
      %43 = vsyncadd [#allocation7], %s42
      %s44 = sshll.u32 [#allocation8], 4
      %s45 = int_to_ptr.vmem [resolvable:$true] %s44
      %50 = dma.hbm_to_vmem [thread:$0]  %s3, 1024, %s45, [#allocation7], 64, 64, 4
    $region17: #{tpu_custom_call.1} parent=1 // pred_fallthru
      _
    // Predicated region
    $region18: #{tpu_custom_call.1} parent=1 // pred_check
      _
    $region19: #{tpu_custom_call.1} parent=1 // pred_check_branch
      %52 = sbr.rel (0) target = $region21
    $region20: #{tpu_custom_call.1} parent=1 // pred_region
      _
    $region21: #{tpu_custom_call.1} parent=1 // pred_fallthru
      _
    // Predicated region
    $region22: #{tpu_custom_call.1} parent=1 // pred_check
      _
    $region23: #{tpu_custom_call.1} parent=1 // pred_check_branch
      %54 = sbr.rel (0) target = $region25
    $region24: #{tpu_custom_call.1} parent=1 // pred_region
      %55 = dma.done [#allocation4], 256
    $region25: #{tpu_custom_call.1} parent=1 // pred_fallthru
      _
    // Predicated region
    $region26: #{tpu_custom_call.1} parent=1 // pred_check
      _
    $region27: #{tpu_custom_call.1} parent=1 // pred_check_branch
      %57 = sbr.rel (0) target = $region29
    $region28: #{tpu_custom_call.1} parent=1 // pred_region
      %58 = dma.done [#allocation7], 1024
    $region29: #{tpu_custom_call.1} parent=1 // pred_fallthru
      _
    // Predicated region
    $region30: #{tpu_custom_call.1} parent=1 // pred_check
      _
    $region31: #{tpu_custom_call.1} parent=1 // pred_check_branch
      %60 = sbr.rel (0) target = $region33
    $region32: #{tpu_custom_call.1} parent=1 // pred_region
      %61 = dma.done [#allocation7], 1024
    $region33: #{tpu_custom_call.1} parent=1 // pred_fallthru
      _
    %p63 = scmp.eq.s32.totalorder 0, 0
    // Predicated region
    $region34: #{tpu_custom_call.1} parent=1 // pred_check
      %p64 = pneg %p63
    $region35: #{tpu_custom_call.1} parent=1 // pred_check_branch
      %66 = sbr.rel (%p64) target = $region37
    $region36: #{tpu_custom_call.1} parent=1 // pred_region
      %67 = vst [vmem:[#allocation2] sm:$0xff] 0.0
      %68 = vst [vmem:[#allocation2 + $0x8] sm:$0xff] 0.0
      %69 = vst [vmem:[#allocation2 + $0x10] sm:$0xff] 0.0
      %70 = vst [vmem:[#allocation2 + $0x18] sm:$0xff] 0.0
    $region37: #{tpu_custom_call.1} parent=1 // pred_fallthru
      _
    %v71 = vld [vmem:[#allocation3] sm:$0xf]
    %v72 = vld [vmem:[#allocation3 + $0x4] sm:$0xf]
    %v73 = vld [vmem:[#allocation3 + $0x8] sm:$0xf]
    %v74 = vld [vmem:[#allocation3 + $0xc] sm:$0xf]
    %v75 = vld [vmem:[#allocation6] sm:$0xf]
    %v76 = vld [vmem:[#allocation6 + $0x4] sm:$0xf]
    %v77 = vld [vmem:[#allocation6 + $0x8] sm:$0xf]
    %v78 = vld [vmem:[#allocation6 + $0xc] sm:$0xf]
    %v79 = vld [vmem:[#allocation6 + $0x10] sm:$0xf]
    %v80 = vld [vmem:[#allocation6 + $0x14] sm:$0xf]
    %v81 = vld [vmem:[#allocation6 + $0x18] sm:$0xf]
    %v82 = vld [vmem:[#allocation6 + $0x1c] sm:$0xf]
    %v83 = vld [vmem:[#allocation6 + $0x20] sm:$0xf]
    %v84 = vld [vmem:[#allocation6 + $0x24] sm:$0xf]
    %v85 = vld [vmem:[#allocation6 + $0x28] sm:$0xf]
    %v86 = vld [vmem:[#allocation6 + $0x2c] sm:$0xf]
    %v87 = vld [vmem:[#allocation6 + $0x30] sm:$0xf]
    %v88 = vld [vmem:[#allocation6 + $0x34] sm:$0xf]
    %v89 = vld [vmem:[#allocation6 + $0x38] sm:$0xf]
    %v90 = vld [vmem:[#allocation6 + $0x3c] sm:$0xf]
    %v91 = vld [vmem:[%s2] sm:$0x1]
    %v93 = vlaneseq
    %v94 = vshrl.u32 %v93, 7
    %v95 = vsub.s32 0, %v94
    %v96 = vrot.slane %v91, %v95
    %v102 = vunpack.c.l.b16 %v71
    %v103 = vunpack.c.l.b16 %v72
    %v104 = vunpack.c.l.b16 %v73
    %v105 = vunpack.c.l.b16 %v74
    %v106 = vpack.c.b16 %v103, %v102
    %v107 = vpack.c.b16 %v105, %v104
    %v126 = vunpack.c.l.b16 %v75
    %v127 = vunpack.c.l.b16 %v76
    %v128 = vunpack.c.l.b16 %v77
    %v129 = vunpack.c.l.b16 %v78
    %v130 = vunpack.c.l.b16 %v79
    %v131 = vunpack.c.l.b16 %v80
    %v132 = vunpack.c.l.b16 %v81
    %v133 = vunpack.c.l.b16 %v82
    %v134 = vunpack.c.l.b16 %v83
    %v135 = vunpack.c.l.b16 %v84
    %v136 = vunpack.c.l.b16 %v85
    %v137 = vunpack.c.l.b16 %v86
    %v138 = vunpack.c.l.b16 %v87
    %v139 = vunpack.c.l.b16 %v88
    %v140 = vunpack.c.l.b16 %v89
    %v141 = vunpack.c.l.b16 %v90
    %v142 = vpack.c.b16 %v127, %v126
    %v143 = vpack.c.b16 %v129, %v128
    %v144 = vpack.c.b16 %v131, %v130
    %v145 = vpack.c.b16 %v133, %v132
    %v146 = vpack.c.b16 %v135, %v134
    %v147 = vpack.c.b16 %v137, %v136
    %v148 = vpack.c.b16 %v139, %v138
    %v149 = vpack.c.b16 %v141, %v140
    %158 = vmatprep.subr.bf16.mxu0 0
    %159 = vmatpush1.bf16.msra.mxu0 %v149
    %160 = vmatprep.subr.bf16.mxu0 0
    %161 = vmatpush1.bf16.msra.mxu0 %v148
    %162 = vmatprep.subr.bf16.mxu0 0
    %163 = vmatpush1.bf16.msra.mxu0 %v147
    %164 = vmatprep.subr.bf16.mxu0 0
    %165 = vmatpush1.bf16.msra.mxu0 %v146
    %166 = vmatprep.subr.bf16.mxu0 0
    %167 = vmatpush1.bf16.msra.mxu0 %v145
    %168 = vmatprep.subr.bf16.mxu0 0
    %169 = vmatpush1.bf16.msra.mxu0 %v144
    %170 = vmatprep.subr.bf16.mxu0 0
    %171 = vmatpush1.bf16.msra.mxu0 %v143
    %172 = vmatprep.subr.bf16.mxu0 0
    %173 = vmatpush1.bf16.msra.mxu0 %v142
    %174 = vmatprep.subr.bf16.mxu0 0
    %175 = vmatpush2.bf16.msra.mxu0 0
    %176 = vmatprep.subr.bf16.mxu0 0
    %177 = vmatpush2.bf16.msra.mxu0 0
    %178 = vmatprep.subr.bf16.mxu0 0
    %179 = vmatpush2.bf16.msra.mxu0 0
    %180 = vmatprep.subr.bf16.mxu0 0
    %181 = vmatpush2.bf16.msra.mxu0 0
    %182 = vmatprep.subr.bf16.mxu0 0
    %183 = vmatpush2.bf16.msra.mxu0 0
    %184 = vmatprep.subr.bf16.mxu0 0
    %185 = vmatpush2.bf16.msra.mxu0 0
    %186 = vmatprep.subr.bf16.mxu0 0
    %187 = vmatpush2.bf16.msra.mxu0 0
    %188 = vmatprep.subr.bf16.mxu0 0
    %189 = vmatpush2.bf16.msra.mxu0 0
    %190 = vmatprep.mubr.bf16.mxu0 0
    %191 = vmatmul.mubr.bf16.gmra.mxu0 %v106
    %v192 = vpop.f32.mrf.mxu0
    %v193 = vadd.f32 %v96, %v192
    %v194 = vpop.f32.mrf.mxu0
    %v195 = vpop.f32.mrf.mxu0
    %v196 = vadd.f32 %v96, %v195
    %v197 = vpop.f32.mrf.mxu0
    %198 = vmatprep.mubr.bf16.mxu0 0
    %199 = vmatmul.mubr.bf16.gmra.mxu0 %v107
    %v200 = vpop.f32.mrf.mxu0
    %v201 = vadd.f32 %v96, %v200
    %v202 = vpop.f32.mrf.mxu0
    %v203 = vpop.f32.mrf.mxu0
    %v204 = vadd.f32 %v96, %v203
    %v205 = vpop.f32.mrf.mxu0
    %206 = vdwg.mxu0
    %v207 = vmax.f32 %v193, 0.0
    %v208 = vmax.f32 %v196, 0.0
    %v209 = vmax.f32 %v201, 0.0
    %v210 = vmax.f32 %v204, 0.0
    %v211 = vld [vmem:[#allocation2] sm:$0xff]
    %v212 = vld [vmem:[#allocation2 + $0x8] sm:$0xff]
    %v213 = vld [vmem:[#allocation2 + $0x10] sm:$0xff]
    %v214 = vld [vmem:[#allocation2 + $0x18] sm:$0xff]
    %v215 = vpack.c.bf16 %v208, %v207
    %v216 = vpack.c.bf16 %v210, %v209
    %v217 = vld [vmem:[#allocation8] sm:$0xf]
    %v218 = vld [vmem:[#allocation8 + $0x4] sm:$0xf]
    %v219 = vld [vmem:[#allocation8 + $0x8] sm:$0xf]
    %v220 = vld [vmem:[#allocation8 + $0xc] sm:$0xf]
    %v221 = vld [vmem:[#allocation8 + $0x10] sm:$0xf]
    %v222 = vld [vmem:[#allocation8 + $0x14] sm:$0xf]
    %v223 = vld [vmem:[#allocation8 + $0x18] sm:$0xf]
    %v224 = vld [vmem:[#allocation8 + $0x1c] sm:$0xf]
    %v225 = vld [vmem:[#allocation8 + $0x20] sm:$0xf]
    %v226 = vld [vmem:[#allocation8 + $0x24] sm:$0xf]
    %v227 = vld [vmem:[#allocation8 + $0x28] sm:$0xf]
    %v228 = vld [vmem:[#allocation8 + $0x2c] sm:$0xf]
    %v229 = vld [vmem:[#allocation8 + $0x30] sm:$0xf]
    %v230 = vld [vmem:[#allocation8 + $0x34] sm:$0xf]
    %v231 = vld [vmem:[#allocation8 + $0x38] sm:$0xf]
    %v232 = vld [vmem:[#allocation8 + $0x3c] sm:$0xf]
    %v249 = vunpack.c.l.b16 %v217
    %v250 = vunpack.c.l.b16 %v218
    %v251 = vunpack.c.l.b16 %v219
    %v252 = vunpack.c.l.b16 %v220
    %v253 = vunpack.c.l.b16 %v221
    %v254 = vunpack.c.l.b16 %v222
    %v255 = vunpack.c.l.b16 %v223
    %v256 = vunpack.c.l.b16 %v224
    %v257 = vunpack.c.l.b16 %v225
    %v258 = vunpack.c.l.b16 %v226
    %v259 = vunpack.c.l.b16 %v227
    %v260 = vunpack.c.l.b16 %v228
    %v261 = vunpack.c.l.b16 %v229
    %v262 = vunpack.c.l.b16 %v230
    %v263 = vunpack.c.l.b16 %v231
    %v264 = vunpack.c.l.b16 %v232
    %v265 = vpack.c.b16 %v250, %v249
    %v266 = vpack.c.b16 %v252, %v251
    %v267 = vpack.c.b16 %v254, %v253
    %v268 = vpack.c.b16 %v256, %v255
    %v269 = vpack.c.b16 %v258, %v257
    %v270 = vpack.c.b16 %v260, %v259
    %v271 = vpack.c.b16 %v262, %v261
    %v272 = vpack.c.b16 %v264, %v263
    %281 = vmatprep.subr.bf16.mxu0 0
    %282 = vmatpush1.bf16.msra.mxu0 %v272
    %283 = vmatprep.subr.bf16.mxu0 0
    %284 = vmatpush1.bf16.msra.mxu0 %v271
    %285 = vmatprep.subr.bf16.mxu0 0
    %286 = vmatpush1.bf16.msra.mxu0 %v270
    %287 = vmatprep.subr.bf16.mxu0 0
    %288 = vmatpush1.bf16.msra.mxu0 %v269
    %289 = vmatprep.subr.bf16.mxu0 0
    %290 = vmatpush1.bf16.msra.mxu0 %v268
    %291 = vmatprep.subr.bf16.mxu0 0
    %292 = vmatpush1.bf16.msra.mxu0 %v267
    %293 = vmatprep.subr.bf16.mxu0 0
    %294 = vmatpush1.bf16.msra.mxu0 %v266
    %295 = vmatprep.subr.bf16.mxu0 0
    %296 = vmatpush1.bf16.msra.mxu0 %v265
    %297 = vmatprep.subr.bf16.mxu0 0
    %298 = vmatpush2.bf16.msra.mxu0 0
    %299 = vmatprep.subr.bf16.mxu0 0
    %300 = vmatpush2.bf16.msra.mxu0 0
    %301 = vmatprep.subr.bf16.mxu0 0
    %302 = vmatpush2.bf16.msra.mxu0 0
    %303 = vmatprep.subr.bf16.mxu0 0
    %304 = vmatpush2.bf16.msra.mxu0 0
    %305 = vmatprep.subr.bf16.mxu0 0
    %306 = vmatpush2.bf16.msra.mxu0 0
    %307 = vmatprep.subr.bf16.mxu0 0
    %308 = vmatpush2.bf16.msra.mxu0 0
    %309 = vmatprep.subr.bf16.mxu0 0
    %310 = vmatpush2.bf16.msra.mxu0 0
    %311 = vmatprep.subr.bf16.mxu0 0
    %312 = vmatpush2.bf16.msra.mxu0 0
    %313 = vmatprep.mubr.bf16.mxu0 0
    %314 = vmatmul.mubr.bf16.gmra.mxu0 %v215
    %v315 = vpop.f32.mrf.mxu0
    %v316 = vadd.f32 0.0, %v315
    %v317 = vpop.f32.mrf.mxu0
    %v318 = vpop.f32.mrf.mxu0
    %v319 = vadd.f32 0.0, %v318
    %v320 = vpop.f32.mrf.mxu0
    %321 = vmatprep.mubr.bf16.mxu0 0
    %322 = vmatmul.mubr.bf16.gmra.mxu0 %v216
    %v323 = vpop.f32.mrf.mxu0
    %v324 = vadd.f32 0.0, %v323
    %v325 = vpop.f32.mrf.mxu0
    %v326 = vpop.f32.mrf.mxu0
    %v327 = vadd.f32 0.0, %v326
    %v328 = vpop.f32.mrf.mxu0
    %329 = vdwg.mxu0
    %v330 = vadd.f32 %v211, %v316
    %v331 = vadd.f32 %v212, %v319
    %v332 = vadd.f32 %v213, %v324
    %v333 = vadd.f32 %v214, %v327
    %334 = vst [vmem:[#allocation2] sm:$0xff] %v330
    %335 = vst [vmem:[#allocation2 + $0x8] sm:$0xff] %v331
    %336 = vst [vmem:[#allocation2 + $0x10] sm:$0xff] %v332
    %337 = vst [vmem:[#allocation2 + $0x18] sm:$0xff] %v333
    // Predicated region
    $region38: #{tpu_custom_call.1} parent=1 // pred_check
      %p338 = pneg %p63
    $region39: #{tpu_custom_call.1} parent=1 // pred_check_branch
      %340 = sbr.rel (%p338) target = $region41
    $region40: #{tpu_custom_call.1} parent=1 // pred_region
      %v341 = vld [vmem:[#allocation2] sm:$0xff]
      %v342 = vld [vmem:[#allocation2 + $0x8] sm:$0xff]
      %v343 = vld [vmem:[#allocation2 + $0x10] sm:$0xff]
      %v344 = vld [vmem:[#allocation2 + $0x18] sm:$0xff]
      %v345 = vld [vmem:[%s4] sm:$0x1]
      %v347 = vlaneseq
      %v348 = vshrl.u32 %v347, 7
      %v349 = vsub.s32 0, %v348
      %v350 = vrot.slane %v345, %v349
      %v352 = vadd.f32 %v341, %v350
      %v353 = vadd.f32 %v342, %v350
      %v354 = vadd.f32 %v343, %v350
      %v355 = vadd.f32 %v344, %v350
      %356 = vst [vmem:[#allocation9] sm:$0xff] %v352
      %357 = vst [vmem:[#allocation9 + $0x8] sm:$0xff] %v353
      %358 = vst [vmem:[#allocation9 + $0x10] sm:$0xff] %v354
      %359 = vst [vmem:[#allocation9 + $0x18] sm:$0xff] %v355
    $region41: #{tpu_custom_call.1} parent=1 // pred_fallthru
      _
    // Predicated region
    $region42: #{tpu_custom_call.1} parent=1 // pred_check
      _
    $region43: #{tpu_custom_call.1} parent=1 // pred_check_branch
      %361 = sbr.rel (0) target = $region45
    $region44: #{tpu_custom_call.1} parent=1 // pred_region
      %s363 = ssub.s32 512, 512
      %364 = vsyncadd [#allocation5], %s363
      %s365 = sshll.u32 [#allocation9], 4
      %s366 = int_to_ptr.vmem [resolvable:$true] %s365
      %371 = dma.vmem_to_hbm [thread:$0]  %s366, 512, %s5, [#allocation5], 128, 128, 8
    $region45: #{tpu_custom_call.1} parent=1 // pred_fallthru
      _
    // Predicated region
    $region46: #{tpu_custom_call.1} parent=1 // pred_check
      _
    $region47: #{tpu_custom_call.1} parent=1 // pred_check_branch
      %373 = sbr.rel (0) target = $region49
    $region48: #{tpu_custom_call.1} parent=1 // pred_region
      %374 = dma.done [#allocation5], 512
    $region49: #{tpu_custom_call.1} parent=1 // pred_fallthru
      _
    %375 = vsyncpa [#allocation4], 1
    %376 = vsyncpa [#allocation7], 1
    %377 = vsyncpa [#allocation5], 1

// kernel: tpu_custom_call.1
$region0: #{tpu_custom_call.1}
  #allocation0 [shape = 'u32[]', space=smem, size = 0x4, offset = 0x4, fixed_abs, tag = 'smem constant byte address 0x4 - core index']
  #allocation1 [shape = 'u32[144,128]{1,0:T(1,128)}', space=vmem, size = 0x12000, scoped, tag = 'internal scratch']
  #allocation2 [shape = 'f32[32,128]{1,0:T(8,128)}', space=vmem, size = 0x4000, scoped, tag = 'scratch operand']
  %s0 = inlined_call_operand.hbm [shape: bf16[32,128], index: 0, kind: input, shape index: {}]
  %s1 = inlined_call_operand.hbm [shape: bf16[128,128], index: 1, kind: input, shape index: {}]
  %s2 = inlined_call_operand.vmem [shape: f32[1,128], index: 2, kind: input, shape index: {}]
  %s3 = inlined_call_operand.hbm [shape: bf16[128,128], index: 3, kind: input, shape index: {}]
  %s4 = inlined_call_operand.vmem [shape: f32[1,128], index: 4, kind: input, shape index: {}]
  %s5 = inlined_call_operand.hbm [shape: f32[32,128], index: 5, kind: output, shape index: {}]
  %s6 = sld [smem:[#allocation0]]
  $region50: #{tpu_custom_call.1} parent=0
    _
  %s8 = ssub.s32 1, %s6
  %s9 = scalar_select 0, %s8, %s6
  $region1: #{tpu_custom_call.1} parent=0
    #allocation3 [shape = 'u8[8192]{0}', space=vmem, size = 0x2000, scoped, tag = 'input window, operand 0, single buffered']
    #allocation4 [shape = 's32[1]{0}', space=sflag, size = 0x4, scoped, tag = 'scoped memory for tpu_custom_call.1']
    #allocation5 [shape = 's32[1]{0}', space=sflag, size = 0x4, scoped, tag = 'scoped memory for tpu_custom_call.1']
    #allocation6 [shape = 'u8[32768]{0}', space=vmem, size = 0x8000, scoped, tag = 'input window, operand 1, single buffered']
    #allocation7 [shape = 's32[1]{0}', space=sflag, size = 0x4, scoped, tag = 'scoped memory for tpu_custom_call.1']
    #allocation8 [shape = 'u8[32768]{0}', space=vmem, size = 0x8000, scoped, tag = 'input window, operand 3, single buffered']
    #allocation9 [shape = 'u8[16384]{0}', space=vmem, size = 0x4000, scoped, tag = 'output window, operand 0, single buffered']
    %10 = vsyncpa [#allocation4], 0
    %11 = vsyncpa [#allocation7], 0
    %12 = vsyncpa [#allocation5], 0
    // Predicated region
    $region2: #{tpu_custom_call.1} parent=1 // pred_check
      _
    $region3: #{tpu_custom_call.1} parent=1 // pred_check_branch
      %14 = sbr.rel (0) target = $region5
    $region4: #{tpu_custom_call.1} parent=1 // pred_region
      %s16 = ssub.s32 256, 256
      %17 = vsyncadd [#allocation4], %s16
      %s18 = sshll.u32 [#allocation3], 4
      %s19 = int_to_ptr.vmem [resolvable:$true] %s18
      %24 = dma.hbm_to_vmem [thread:$0]  %s0, 256, %s19, [#allocation4], 64, 64, 4
    $region5: #{tpu_custom_call.1} parent=1 // pred_fallthru
      _
    // Predicated region
    $region6: #{tpu_custom_call.1} parent=1 // pred_check
      _
    $region7: #{tpu_custom_call.1} parent=1 // pred_check_branch
      %26 = sbr.rel (0) target = $region9
    $region8: #{tpu_custom_call.1} parent=1 // pred_region
      %s28 = ssub.s32 1024, 1024
      %29 = vsyncadd [#allocation7], %s28
      %s30 = sshll.u32 [#allocation6], 4
      %s31 = int_to_ptr.vmem [resolvable:$true] %s30
      %36 = dma.hbm_to_vmem [thread:$0]  %s1, 1024, %s31, [#allocation7], 64, 64, 4
    $region9: #{tpu_custom_call.1} parent=1 // pred_fallthru
      _
    // Predicated region
    $region10: #{tpu_custom_call.1} parent=1 // pred_check
      _
    $region11: #{tpu_custom_call.1} parent=1 // pred_check_branch
      %38 = sbr.rel (0) target = $region13
    $region12: #{tpu_custom_call.1} parent=1 // pred_region
      _
    $region13: #{tpu_custom_call.1} parent=1 // pred_fallthru
      _
    // Predicated region
    $region14: #{tpu_custom_call.1} parent=1 // pred_check
      _
    $region15: #{tpu_custom_call.1} parent=1 // pred_check_branch
      %40 = sbr.rel (0) target = $region17
    $region16: #{tpu_custom_call.1} parent=1 // pred_region
      %s42 = ssub.s32 1024, 1024
      %43 = vsyncadd [#allocation7], %s42
      %s44 = sshll.u32 [#allocation8], 4
      %s45 = int_to_ptr.vmem [resolvable:$true] %s44
      %50 = dma.hbm_to_vmem [thread:$0]  %s3, 1024, %s45, [#allocation7], 64, 64, 4
    $region17: #{tpu_custom_call.1} parent=1 // pred_fallthru
      _
    // Predicated region
    $region18: #{tpu_custom_call.1} parent=1 // pred_check
      _
    $region19: #{tpu_custom_call.1} parent=1 // pred_check_branch
      %52 = sbr.rel (0) target = $region21
    $region20: #{tpu_custom_call.1} parent=1 // pred_region
      _
    $region21: #{tpu_custom_call.1} parent=1 // pred_fallthru
      _
    // Predicated region
    $region22: #{tpu_custom_call.1} parent=1 // pred_check
      _
    $region23: #{tpu_custom_call.1} parent=1 // pred_check_branch
      %54 = sbr.rel (0) target = $region25
    $region24: #{tpu_custom_call.1} parent=1 // pred_region
      %55 = dma.done [#allocation4], 256
    $region25: #{tpu_custom_call.1} parent=1 // pred_fallthru
      _
    // Predicated region
    $region26: #{tpu_custom_call.1} parent=1 // pred_check
      _
    $region27: #{tpu_custom_call.1} parent=1 // pred_check_branch
      %57 = sbr.rel (0) target = $region29
    $region28: #{tpu_custom_call.1} parent=1 // pred_region
      %58 = dma.done [#allocation7], 1024
    $region29: #{tpu_custom_call.1} parent=1 // pred_fallthru
      _
    // Predicated region
    $region30: #{tpu_custom_call.1} parent=1 // pred_check
      _
    $region31: #{tpu_custom_call.1} parent=1 // pred_check_branch
      %60 = sbr.rel (0) target = $region33
    $region32: #{tpu_custom_call.1} parent=1 // pred_region
      %61 = dma.done [#allocation7], 1024
    $region33: #{tpu_custom_call.1} parent=1 // pred_fallthru
      _
    %p63 = scmp.eq.s32.totalorder 0, 0
    // Predicated region
    $region34: #{tpu_custom_call.1} parent=1 // pred_check
      %p64 = pneg %p63
    $region35: #{tpu_custom_call.1} parent=1 // pred_check_branch
      %66 = sbr.rel (%p64) target = $region37
    $region36: #{tpu_custom_call.1} parent=1 // pred_region
      %67 = vst [vmem:[#allocation2] sm:$0xff] 0.0
      %68 = vst [vmem:[#allocation2 + $0x8] sm:$0xff] 0.0
      %69 = vst [vmem:[#allocation2 + $0x10] sm:$0xff] 0.0
      %70 = vst [vmem:[#allocation2 + $0x18] sm:$0xff] 0.0
    $region37: #{tpu_custom_call.1} parent=1 // pred_fallthru
      _
    %v71 = vld [vmem:[#allocation3] sm:$0xf]
    %v72 = vld [vmem:[#allocation3 + $0x4] sm:$0xf]
    %v73 = vld [vmem:[#allocation3 + $0x8] sm:$0xf]
    %v74 = vld [vmem:[#allocation3 + $0xc] sm:$0xf]
    %v75 = vld [vmem:[#allocation6] sm:$0xf]
    %v76 = vld [vmem:[#allocation6 + $0x4] sm:$0xf]
    %v77 = vld [vmem:[#allocation6 + $0x8] sm:$0xf]
    %v78 = vld [vmem:[#allocation6 + $0xc] sm:$0xf]
    %v79 = vld [vmem:[#allocation6 + $0x10] sm:$0xf]
    %v80 = vld [vmem:[#allocation6 + $0x14] sm:$0xf]
    %v81 = vld [vmem:[#allocation6 + $0x18] sm:$0xf]
    %v82 = vld [vmem:[#allocation6 + $0x1c] sm:$0xf]
    %v83 = vld [vmem:[#allocation6 + $0x20] sm:$0xf]
    %v84 = vld [vmem:[#allocation6 + $0x24] sm:$0xf]
    %v85 = vld [vmem:[#allocation6 + $0x28] sm:$0xf]
    %v86 = vld [vmem:[#allocation6 + $0x2c] sm:$0xf]
    %v87 = vld [vmem:[#allocation6 + $0x30] sm:$0xf]
    %v88 = vld [vmem:[#allocation6 + $0x34] sm:$0xf]
    %v89 = vld [vmem:[#allocation6 + $0x38] sm:$0xf]
    %v90 = vld [vmem:[#allocation6 + $0x3c] sm:$0xf]
    %v91 = vld [vmem:[%s2] sm:$0x1]
    %v93 = vlaneseq
    %v94 = vshrl.u32 %v93, 7
    %v95 = vsub.s32 0, %v94
    %v96 = vrot.slane %v91, %v95
    %v102 = vunpack.c.l.b16 %v71
    %v103 = vunpack.c.l.b16 %v72
    %v104 = vunpack.c.l.b16 %v73
    %v105 = vunpack.c.l.b16 %v74
    %v106 = vpack.c.b16 %v103, %v102
    %v107 = vpack.c.b16 %v105, %v104
    %v126 = vunpack.c.l.b16 %v75
    %v127 = vunpack.c.l.b16 %v76
    %v128 = vunpack.c.l.b16 %v77
    %v129 = vunpack.c.l.b16 %v78
    %v130 = vunpack.c.l.b16 %v79
    %v131 = vunpack.c.l.b16 %v80
    %v132 = vunpack.c.l.b16 %v81
    %v133 = vunpack.c.l.b16 %v82
    %v134 = vunpack.c.l.b16 %v83
    %v135 = vunpack.c.l.b16 %v84
    %v136 = vunpack.c.l.b16 %v85
    %v137 = vunpack.c.l.b16 %v86
    %v138 = vunpack.c.l.b16 %v87
    %v139 = vunpack.c.l.b16 %v88
    %v140 = vunpack.c.l.b16 %v89
    %v141 = vunpack.c.l.b16 %v90
    %v142 = vpack.c.b16 %v127, %v126
    %v143 = vpack.c.b16 %v129, %v128
    %v144 = vpack.c.b16 %v131, %v130
    %v145 = vpack.c.b16 %v133, %v132
    %v146 = vpack.c.b16 %v135, %v134
    %v147 = vpack.c.b16 %v137, %v136
    %v148 = vpack.c.b16 %v139, %v138
    %v149 = vpack.c.b16 %v141, %v140
    %158 = vmatprep.subr.bf16.mxu0 0
    %159 = vmatpush1.bf16.msra.mxu0 %v149
    %160 = vmatprep.subr.bf16.mxu0 0
    %161 = vmatpush1.bf16.msra.mxu0 %v148
    %162 = vmatprep.subr.bf16.mxu0 0
    %163 = vmatpush1.bf16.msra.mxu0 %v147
    %164 = vmatprep.subr.bf16.mxu0 0
    %165 = vmatpush1.bf16.msra.mxu0 %v146
    %166 = vmatprep.subr.bf16.mxu0 0
    %167 = vmatpush1.bf16.msra.mxu0 %v145
    %168 = vmatprep.subr.bf16.mxu0 0
    %169 = vmatpush1.bf16.msra.mxu0 %v144
    %170 = vmatprep.subr.bf16.mxu0 0
    %171 = vmatpush1.bf16.msra.mxu0 %v143
    %172 = vmatprep.subr.bf16.mxu0 0
    %173 = vmatpush1.bf16.msra.mxu0 %v142
    %174 = vmatprep.subr.bf16.mxu0 0
    %175 = vmatpush2.bf16.msra.mxu0 0
    %176 = vmatprep.subr.bf16.mxu0 0
    %177 = vmatpush2.bf16.msra.mxu0 0
    %178 = vmatprep.subr.bf16.mxu0 0
    %179 = vmatpush2.bf16.msra.mxu0 0
    %180 = vmatprep.subr.bf16.mxu0 0
    %181 = vmatpush2.bf16.msra.mxu0 0
    %182 = vmatprep.subr.bf16.mxu0 0
    %183 = vmatpush2.bf16.msra.mxu0 0
    %184 = vmatprep.subr.bf16.mxu0 0
    %185 = vmatpush2.bf16.msra.mxu0 0
    %186 = vmatprep.subr.bf16.mxu0 0
    %187 = vmatpush2.bf16.msra.mxu0 0
    %188 = vmatprep.subr.bf16.mxu0 0
    %189 = vmatpush2.bf16.msra.mxu0 0
    %190 = vmatprep.mubr.bf16.mxu0 0
    %191 = vmatmul.mubr.bf16.gmra.mxu0 %v106
    %v192 = vpop.f32.mrf.mxu0
    %v193 = vadd.f32 %v96, %v192
    %v194 = vpop.f32.mrf.mxu0
    %v195 = vpop.f32.mrf.mxu0
    %v196 = vadd.f32 %v96, %v195
    %v197 = vpop.f32.mrf.mxu0
    %198 = vmatprep.mubr.bf16.mxu0 0
    %199 = vmatmul.mubr.bf16.gmra.mxu0 %v107
    %v200 = vpop.f32.mrf.mxu0
    %v201 = vadd.f32 %v96, %v200
    %v202 = vpop.f32.mrf.mxu0
    %v203 = vpop.f32.mrf.mxu0
    %v204 = vadd.f32 %v96, %v203
    %v205 = vpop.f32.mrf.mxu0
    %206 = vdwg.mxu0
    %v207 = vmax.f32 %v193, 0.0
    %v208 = vmax.f32 %v196, 0.0
    %v209 = vmax.f32 %v201, 0.0
    %v210 = vmax.f32 %v204, 0.0
    %v211 = vld [vmem:[#allocation2] sm:$0xff]
    %v212 = vld [vmem:[#allocation2 + $0x8] sm:$0xff]
    %v213 = vld [vmem:[#allocation2 + $0x10] sm:$0xff]
    %v214 = vld [vmem:[#allocation2 + $0x18] sm:$0xff]
    %v215 = vpack.c.bf16 %v208, %v207
    %v216 = vpack.c.bf16 %v210, %v209
    %v217 = vld [vmem:[#allocation8] sm:$0xf]
    %v218 = vld [vmem:[#allocation8 + $0x4] sm:$0xf]
    %v219 = vld [vmem:[#allocation8 + $0x8] sm:$0xf]
    %v220 = vld [vmem:[#allocation8 + $0xc] sm:$0xf]
    %v221 = vld [vmem:[#allocation8 + $0x10] sm:$0xf]
    %v222 = vld [vmem:[#allocation8 + $0x14] sm:$0xf]
    %v223 = vld [vmem:[#allocation8 + $0x18] sm:$0xf]
    %v224 = vld [vmem:[#allocation8 + $0x1c] sm:$0xf]
    %v225 = vld [vmem:[#allocation8 + $0x20] sm:$0xf]
    %v226 = vld [vmem:[#allocation8 + $0x24] sm:$0xf]
    %v227 = vld [vmem:[#allocation8 + $0x28] sm:$0xf]
    %v228 = vld [vmem:[#allocation8 + $0x2c] sm:$0xf]
    %v229 = vld [vmem:[#allocation8 + $0x30] sm:$0xf]
    %v230 = vld [vmem:[#allocation8 + $0x34] sm:$0xf]
    %v231 = vld [vmem:[#allocation8 + $0x38] sm:$0xf]
    %v232 = vld [vmem:[#allocation8 + $0x3c] sm:$0xf]
    %v249 = vunpack.c.l.b16 %v217
    %v250 = vunpack.c.l.b16 %v218
    %v251 = vunpack.c.l.b16 %v219
    %v252 = vunpack.c.l.b16 %v220
    %v253 = vunpack.c.l.b16 %v221
    %v254 = vunpack.c.l.b16 %v222
    %v255 = vunpack.c.l.b16 %v223
    %v256 = vunpack.c.l.b16 %v224
    %v257 = vunpack.c.l.b16 %v225
    %v258 = vunpack.c.l.b16 %v226
    %v259 = vunpack.c.l.b16 %v227
    %v260 = vunpack.c.l.b16 %v228
    %v261 = vunpack.c.l.b16 %v229
    %v262 = vunpack.c.l.b16 %v230
    %v263 = vunpack.c.l.b16 %v231
    %v264 = vunpack.c.l.b16 %v232
    %v265 = vpack.c.b16 %v250, %v249
    %v266 = vpack.c.b16 %v252, %v251
    %v267 = vpack.c.b16 %v254, %v253
    %v268 = vpack.c.b16 %v256, %v255
    %v269 = vpack.c.b16 %v258, %v257
    %v270 = vpack.c.b16 %v260, %v259
    %v271 = vpack.c.b16 %v262, %v261
    %v272 = vpack.c.b16 %v264, %v263
    %281 = vmatprep.subr.bf16.mxu0 0
    %282 = vmatpush1.bf16.msra.mxu0 %v272
    %283 = vmatprep.subr.bf16.mxu0 0
    %284 = vmatpush1.bf16.msra.mxu0 %v271
    %285 = vmatprep.subr.bf16.mxu0 0
    %286 = vmatpush1.bf16.msra.mxu0 %v270
    %287 = vmatprep.subr.bf16.mxu0 0
    %288 = vmatpush1.bf16.msra.mxu0 %v269
    %289 = vmatprep.subr.bf16.mxu0 0
    %290 = vmatpush1.bf16.msra.mxu0 %v268
    %291 = vmatprep.subr.bf16.mxu0 0
    %292 = vmatpush1.bf16.msra.mxu0 %v267
    %293 = vmatprep.subr.bf16.mxu0 0
    %294 = vmatpush1.bf16.msra.mxu0 %v266
    %295 = vmatprep.subr.bf16.mxu0 0
    %296 = vmatpush1.bf16.msra.mxu0 %v265
    %297 = vmatprep.subr.bf16.mxu0 0
    %298 = vmatpush2.bf16.msra.mxu0 0
    %299 = vmatprep.subr.bf16.mxu0 0
    %300 = vmatpush2.bf16.msra.mxu0 0
    %301 = vmatprep.subr.bf16.mxu0 0
    %302 = vmatpush2.bf16.msra.mxu0 0
    %303 = vmatprep.subr.bf16.mxu0 0
    %304 = vmatpush2.bf16.msra.mxu0 0
    %305 = vmatprep.subr.bf16.mxu0 0
    %306 = vmatpush2.bf16.msra.mxu0 0
    %307 = vmatprep.subr.bf16.mxu0 0
    %308 = vmatpush2.bf16.msra.mxu0 0
    %309 = vmatprep.subr.bf16.mxu0 0
    %310 = vmatpush2.bf16.msra.mxu0 0
    %311 = vmatprep.subr.bf16.mxu0 0
    %312 = vmatpush2.bf16.msra.mxu0 0
    %313 = vmatprep.mubr.bf16.mxu0 0
    %314 = vmatmul.mubr.bf16.gmra.mxu0 %v215
    %v315 = vpop.f32.mrf.mxu0
    %v316 = vadd.f32 0.0, %v315
    %v317 = vpop.f32.mrf.mxu0
    %v318 = vpop.f32.mrf.mxu0
    %v319 = vadd.f32 0.0, %v318
    %v320 = vpop.f32.mrf.mxu0
    %321 = vmatprep.mubr.bf16.mxu0 0
    %322 = vmatmul.mubr.bf16.gmra.mxu0 %v216
    %v323 = vpop.f32.mrf.mxu0
    %v324 = vadd.f32 0.0, %v323
    %v325 = vpop.f32.mrf.mxu0
    %v326 = vpop.f32.mrf.mxu0
    %v327 = vadd.f32 0.0, %v326
    %v328 = vpop.f32.mrf.mxu0
    %329 = vdwg.mxu0
    %v330 = vadd.f32 %v211, %v316
    %v331 = vadd.f32 %v212, %v319
    %v332 = vadd.f32 %v213, %v324
    %v333 = vadd.f32 %v214, %v327
    %334 = vst [vmem:[#allocation2] sm:$0xff] %v330
    %335 = vst [vmem:[#allocation2 + $0x8] sm:$0xff] %v331
    %336 = vst [vmem:[#allocation2 + $0x10] sm:$0xff] %v332
    %337 = vst [vmem:[#allocation2 + $0x18] sm:$0xff] %v333
    // Predicated region
    $region38: #{tpu_custom_call.1} parent=1 // pred_check
      %p338 = pneg %p63
    $region39: #{tpu_custom_call.1} parent=1 // pred_check_branch
      %340 = sbr.rel (%p338) target = $region41
    $region40: #{tpu_custom_call.1} parent=1 // pred_region
      %v341 = vld [vmem:[#allocation2] sm:$0xff]
      %v342 = vld [vmem:[#allocation2 + $0x8] sm:$0xff]
      %v343 = vld [vmem:[#allocation2 + $0x10] sm:$0xff]
      %v344 = vld [vmem:[#allocation2 + $0x18] sm:$0xff]
      %v345 = vld [vmem:[%s4] sm:$0x1]
      %v347 = vlaneseq
      %v348 = vshrl.u32 %v347, 7
      %v349 = vsub.s32 0, %v348
      %v350 = vrot.slane %v345, %v349
      %v352 = vadd.f32 %v341, %v350
      %v353 = vadd.f32 %v342, %v350
      %v354 = vadd.f32 %v343, %v350
      %v355 = vadd.f32 %v344, %v350
      %356 = vst [vmem:[#allocation9] sm:$0xff] %v352
      %357 = vst [vmem:[#allocation9 + $0x8] sm:$0xff] %v353
      %358 = vst [vmem:[#allocation9 + $0x10] sm:$0xff] %v354
      %359 = vst [vmem:[#allocation9 + $0x18] sm:$0xff] %v355
    $region41: #{tpu_custom_call.1} parent=1 // pred_fallthru
      _
    // Predicated region
    $region42: #{tpu_custom_call.1} parent=1 // pred_check
      _
    $region43: #{tpu_custom_call.1} parent=1 // pred_check_branch
      %361 = sbr.rel (0) target = $region45
    $region44: #{tpu_custom_call.1} parent=1 // pred_region
      %s363 = ssub.s32 512, 512
      %364 = vsyncadd [#allocation5], %s363
      %s365 = sshll.u32 [#allocation9], 4
      %s366 = int_to_ptr.vmem [resolvable:$true] %s365
      %371 = dma.vmem_to_hbm [thread:$0]  %s366, 512, %s5, [#allocation5], 128, 128, 8
    $region45: #{tpu_custom_call.1} parent=1 // pred_fallthru
      _
    // Predicated region
    $region46: #{tpu_custom_call.1} parent=1 // pred_check
      _
    $region47: #{tpu_custom_call.1} parent=1 // pred_check_branch
      %373 = sbr.rel (0) target = $region49
    $region48: #{tpu_custom_call.1} parent=1 // pred_region
      %374 = dma.done [#allocation5], 512
    $region49: #{tpu_custom_call.1} parent=1 // pred_fallthru
      _
    %375 = vsyncpa [#allocation4], 1
    %376 = vsyncpa [#allocation7], 1
    %377 = vsyncpa [#allocation5], 1

</llo_original>
